<compile_context>
chip_gen: v5e
topology: v5e:2x2
jax: 0.10.0
libtpu: 0.0.40
codegen_flags: <defaults>
</compile_context>

<pallas_src>
import functools

import jax
import jax.numpy as jnp
import numpy as np
from jax import lax
from jax.experimental import pallas as pl
from jax.experimental.pallas import tpu as pltpu


def temporal_block_kernel(*refs, L, K, dilation, downsample):
    if downsample:
        (tidx_ref, x_ref, w1_ref, b1_ref, w2_ref, b2_ref,
         wd_ref, bd_ref, out_ref) = refs
    else:
        (tidx_ref, x_ref, w1_ref, b1_ref, w2_ref, b2_ref, out_ref) = refs
        wd_ref = bd_ref = None

    f32 = jnp.float32
    x = x_ref[...].astype(f32)          # (C_in, Nb), lane-dense columns
    t_idx = tidx_ref[...]               # (1, Nb) int32: time index within each segment

    def causal_conv(a, w_ref, b_ref):
        # w_ref: (K, C_out, C); w_ref[j] multiplies the input delayed by
        # (K-1-j)*dilation columns (zero for positions before the segment start).
        acc = jnp.dot(w_ref[K - 1], a, preferred_element_type=f32)   # tap with zero delay
        for j in range(K - 1):
            s = (K - 1 - j) * dilation
            if s >= L:
                continue  # this tap never reaches a valid output column
            delayed = jnp.where(t_idx >= s, pltpu.roll(a, s, axis=1), 0.0)
            acc = acc + jnp.dot(w_ref[j], delayed, preferred_element_type=f32)
        return acc + b_ref[...]

    # conv1 -> bias -> ReLU   (dropout1 = identity in eval mode)
    h = jnp.maximum(causal_conv(x, w1_ref, b1_ref), 0.0)        # (C_out, Nb)
    # conv2 -> bias -> ReLU   (dropout2 = identity in eval mode); h stays in its
    # matmul-output layout, no staging round trip.
    out2 = jnp.maximum(causal_conv(h, w2_ref, b2_ref), 0.0)     # (C_out, Nb)

    # residual path
    if downsample:
        res = jnp.dot(wd_ref[...], x, preferred_element_type=f32) + bd_ref[...]
    else:
        res = x                                                  # C_in == C_out here

    out_ref[...] = jnp.maximum(out2 + res, 0.0).astype(out_ref.dtype)


def _choose_layout(B, L, target_cols=1024):
    """Pick (S, Bb): per-batch segment length S (>= L) and batch elements fused
    per grid step, such that the per-step column count Nb = Bb*S is a multiple
    of 128, preferring >= 2 grid steps (v7x has 2 TensorCores)."""
    # Option 1: no per-segment padding (S = L); need (Bb * L) % 128 == 0.
    cands = [bb for bb in range(1, B + 1) if B % bb == 0 and (bb * L) % 128 == 0]
    if cands:
        pref = [bb for bb in cands if bb < B] or cands
        fit = [bb for bb in pref if bb * L <= target_cols] or [min(pref)]
        return L, max(fit)
    # Option 2: pad each batch segment to a multiple of 128 lanes.
    S = ((L + 127) // 128) * 128
    divs = [bb for bb in range(1, B + 1) if B % bb == 0]
    pref = [bb for bb in divs if bb < B] or divs
    fit = [bb for bb in pref if bb * S <= target_cols] or [min(pref)]
    return S, max(fit)


def temporal_block(x, w1, b1, w2, b2, wd, bd, *, kernel_size, dilation,
                   target_cols=1024):
    """x: (B, C_in, L) like PyTorch NCW.  Conv weights in PyTorch Conv1d layout
    (C_out, C_in, K); wd is (C_out, C_in, 1) or None.  Returns (B, C_out, L)."""
    B, C_in, L = x.shape
    C_out = w1.shape[0]
    K = kernel_size
    downsample = wd is not None
    if not downsample:
        assert C_in == C_out, "identity residual requires n_inputs == n_outputs"

    S, Bb = _choose_layout(B, L, target_cols)
    grid = B // Bb
    Nb = Bb * S
    N_tot = B * S

    # (B, C, L) -> (C, B, S) -> (C, B*S): lane-dense fused column layout.
    xt = jnp.transpose(x, (1, 0, 2))
    if S != L:
        xt = jnp.pad(xt, ((0, 0), (0, 0), (0, S - L)))
    x2d = xt.reshape(C_in, N_tot)

    # Per-tap weight slabs (K, C_out, C): slab j is w[:, :, j], consumed with
    # the input delayed by (K-1-j)*dilation (matches PyTorch pad-then-chomp).
    w1f = jnp.transpose(w1, (2, 0, 1))          # (K, C_out, C_in)
    w2f = jnp.transpose(w2, (2, 0, 1))          # (K, C_out, C_out)

    # Constant per-block time index (blocks start at segment boundaries).
    t_idx = jnp.asarray((np.arange(Nb, dtype=np.int32) % S).reshape(1, Nb))

    args = [t_idx, x2d, w1f, b1.reshape(C_out, 1), w2f, b2.reshape(C_out, 1)]
    in_specs = [
        pl.BlockSpec((1, Nb), lambda i: (0, 0)),
        pl.BlockSpec((C_in, Nb), lambda i: (0, i)),
        pl.BlockSpec((K, C_out, C_in), lambda i: (0, 0, 0)),
        pl.BlockSpec((C_out, 1), lambda i: (0, 0)),
        pl.BlockSpec((K, C_out, C_out), lambda i: (0, 0, 0)),
        pl.BlockSpec((C_out, 1), lambda i: (0, 0)),
    ]
    if downsample:
        args += [wd[:, :, 0], bd.reshape(C_out, 1)]
        in_specs += [
            pl.BlockSpec((C_out, C_in), lambda i: (0, 0)),
            pl.BlockSpec((C_out, 1), lambda i: (0, 0)),
        ]

    flops = 2 * N_tot * K * C_out * (C_in + C_out)
    if downsample:
        flops += 2 * N_tot * C_out * C_in
    bytes_accessed = 4 * (N_tot * (C_in + 2 * C_out)
                          + K * C_out * (C_in + C_out)
                          + (C_out * C_in if downsample else 0)
                          + 3 * C_out + Nb)

    kern = functools.partial(temporal_block_kernel, L=L, K=K, dilation=dilation,
                             downsample=downsample)

    out2d = pl.pallas_call(
        kern,
        out_shape=jax.ShapeDtypeStruct((C_out, N_tot), x.dtype),
        grid=(grid,),
        in_specs=in_specs,
        out_specs=pl.BlockSpec((C_out, Nb), lambda i: (0, i)),
        compiler_params=pltpu.CompilerParams(
            dimension_semantics=("parallel",),
            vmem_limit_bytes=32 * 1024 * 1024),
        cost_estimate=pl.CostEstimate(flops=flops, transcendentals=0,
                                      bytes_accessed=bytes_accessed),
    )(*args)

    out = out2d.reshape(C_out, B, S)[:, :, :L]
    return jnp.transpose(out, (1, 0, 2))


def temporal_block_reference(x, w1, b1, w2, b2, wd, bd, *, kernel_size, dilation):
    """Pure-JAX reference mirroring the PyTorch forward (eval mode)."""
    pad = (kernel_size - 1) * dilation

    def conv1d(x, w, b, dil, p):
        y = lax.conv_general_dilated(
            x, w, window_strides=(1,), padding=[(p, p)],
            rhs_dilation=(dil,), dimension_numbers=('NCH', 'OIH', 'NCH'))
        return y + b[None, :, None]

    out = conv1d(x, w1, b1, dilation, pad)
    out = out[:, :, :-pad] if pad > 0 else out
    out = jnp.maximum(out, 0.0)
    out = conv1d(out, w2, b2, dilation, pad)
    out = out[:, :, :-pad] if pad > 0 else out
    out = jnp.maximum(out, 0.0)
    res = x if wd is None else conv1d(x, wd, bd, 1, 0)
    return jnp.maximum(out + res, 0.0)


if __name__ == "__main__":
    # shapes consistent with the module: n_inputs=4, n_outputs=8,
    # kernel_size=3, stride=1, dilation=2 -> padding=4; batch=2, seq=16.
    B, C_in, C_out, L = 2, 4, 8, 16
    K, dilation = 3, 2

    keys = jax.random.split(jax.random.PRNGKey(0), 12)

    # --- downsample path (n_inputs != n_outputs) -----------------------------
    x = jax.random.normal(keys[0], (B, C_in, L), jnp.float32)
    w1 = jax.random.normal(keys[1], (C_out, C_in, K), jnp.float32) * 0.3
    b1 = jax.random.normal(keys[2], (C_out,), jnp.float32) * 0.1
    w2 = jax.random.normal(keys[3], (C_out, C_out, K), jnp.float32) * 0.3
    b2 = jax.random.normal(keys[4], (C_out,), jnp.float32) * 0.1
    wd = jax.random.normal(keys[5], (C_out, C_in, 1), jnp.float32) * 0.3
    bd = jax.random.normal(keys[6], (C_out,), jnp.float32) * 0.1

    out = jax.block_until_ready(
        temporal_block(x, w1, b1, w2, b2, wd, bd, kernel_size=K, dilation=dilation))
    ref = temporal_block_reference(x, w1, b1, w2, b2, wd, bd,
                                   kernel_size=K, dilation=dilation)
    np.testing.assert_allclose(np.asarray(out), np.asarray(ref), rtol=1e-4, atol=1e-4)

    # --- identity-residual path (n_inputs == n_outputs, no downsample conv) --
    x2 = jax.random.normal(keys[7], (B, C_out, L), jnp.float32)
    w3 = jax.random.normal(keys[8], (C_out, C_out, K), jnp.float32) * 0.3
    b3 = jax.random.normal(keys[9], (C_out,), jnp.float32) * 0.1
    w4 = jax.random.normal(keys[10], (C_out, C_out, K), jnp.float32) * 0.3
    b4 = jax.random.normal(keys[11], (C_out,), jnp.float32) * 0.1

    out2 = jax.block_until_ready(
        temporal_block(x2, w3, b3, w4, b4, None, None,
                       kernel_size=K, dilation=dilation))
    ref2 = temporal_block_reference(x2, w3, b3, w4, b4, None, None,
                                    kernel_size=K, dilation=dilation)
    np.testing.assert_allclose(np.asarray(out2), np.asarray(ref2),
                               rtol=1e-4, atol=1e-4)

    print("KERNEL_OK")
</pallas_src>

<mosaic_0001>
module attributes {stable_mosaic.version = 11 : i64} {
  func.func @temporal_block_kernel(%arg0: i32, %arg1: memref<1x128xi32, #tpu.memory_space<vmem>>, %arg2: memref<4x128xf32, #tpu.memory_space<vmem>>, %arg3: memref<3x8x4xf32, #tpu.memory_space<vmem>>, %arg4: memref<8x1xf32, #tpu.memory_space<vmem>>, %arg5: memref<3x8x8xf32, #tpu.memory_space<vmem>>, %arg6: memref<8x1xf32, #tpu.memory_space<vmem>>, %arg7: memref<8x4xf32, #tpu.memory_space<vmem>>, %arg8: memref<8x1xf32, #tpu.memory_space<vmem>>, %arg9: memref<8x128xf32, #tpu.memory_space<vmem>>) attributes {dimension_semantics = [#tpu.dimension_semantics<parallel>], iteration_bounds = array<i64: 2>, scalar_prefetch = 0 : i64, scratch_operands = 0 : i64, tpu.core_type = #tpu.core_type<tc>, window_params = [{pipeline_mode = #tpu.pipeline_mode<synchronous>, transform_indices = @transform_0, window_bounds = array<i64: 1, 128>}, {transform_indices = @transform_1, window_bounds = array<i64: 4, 128>}, {pipeline_mode = #tpu.pipeline_mode<synchronous>, transform_indices = @transform_2, window_bounds = array<i64: 3, 8, 4>}, {pipeline_mode = #tpu.pipeline_mode<synchronous>, transform_indices = @transform_3, window_bounds = array<i64: 8, 1>}, {pipeline_mode = #tpu.pipeline_mode<synchronous>, transform_indices = @transform_4, window_bounds = array<i64: 3, 8, 8>}, {pipeline_mode = #tpu.pipeline_mode<synchronous>, transform_indices = @transform_5, window_bounds = array<i64: 8, 1>}, {pipeline_mode = #tpu.pipeline_mode<synchronous>, transform_indices = @transform_6, window_bounds = array<i64: 8, 4>}, {pipeline_mode = #tpu.pipeline_mode<synchronous>, transform_indices = @transform_7, window_bounds = array<i64: 8, 1>}, {transform_indices = @transform_8, window_bounds = array<i64: 8, 128>}]} {
    %c0 = arith.constant 0 : index
    %c0_0 = arith.constant 0 : index
    %0 = vector.load %arg2[%c0, %c0_0] : memref<4x128xf32, #tpu.memory_space<vmem>>, vector<4x128xf32>
    %c0_1 = arith.constant 0 : index
    %c0_2 = arith.constant 0 : index
    %1 = vector.load %arg1[%c0_1, %c0_2] : memref<1x128xi32, #tpu.memory_space<vmem>>, vector<1x128xi32>
    %c2 = arith.constant 2 : index
    %c0_3 = arith.constant 0 : index
    %c0_4 = arith.constant 0 : index
    %2 = vector.load %arg3[%c2, %c0_3, %c0_4] : memref<3x8x4xf32, #tpu.memory_space<vmem>>, vector<1x8x4xf32>
    %3 = vector.shape_cast %2 : vector<1x8x4xf32> to vector<8x4xf32>
    %cst = arith.constant dense<0.000000e+00> : vector<8x128xf32>
    %4 = tpu.matmul %3, %0, %cst {dimension_numbers = #tpu.dot_dimension_numbers<[1], [0], [0], [1], [0, 0, 1, 1], [], []>} : vector<8x4xf32>, vector<4x128xf32>, vector<8x128xf32> -> vector<8x128xf32>
    %c4_i32 = arith.constant 4 : i32
    %5 = vector.broadcast %c4_i32 : i32 to vector<1x128xi32>
    %6 = arith.cmpi sge, %1, %5 : vector<1x128xi32>
    %c4_i32_5 = arith.constant 4 : i32
    %7 = tpu.dynamic_rotate %0 by %c4_i32_5 dim 1 : vector<4x128xf32>, i32 -> vector<4x128xf32>
    %cst_6 = arith.constant 0.000000e+00 : f32
    %8 = vector.shape_cast %6 : vector<1x128xi1> to vector<1x128xi1>
    %9 = vector.broadcast %8 : vector<1x128xi1> to vector<4x128xi1>
    %10 = vector.broadcast %cst_6 : f32 to vector<4x128xf32>
    %11 = arith.select %9, %7, %10 : vector<4x128xi1>, vector<4x128xf32>
    %c0_7 = arith.constant 0 : index
    %c0_8 = arith.constant 0 : index
    %c0_9 = arith.constant 0 : index
    %12 = vector.load %arg3[%c0_7, %c0_8, %c0_9] : memref<3x8x4xf32, #tpu.memory_space<vmem>>, vector<1x8x4xf32>
    %13 = vector.shape_cast %12 : vector<1x8x4xf32> to vector<8x4xf32>
    %cst_10 = arith.constant dense<0.000000e+00> : vector<8x128xf32>
    %14 = tpu.matmul %13, %11, %cst_10 {dimension_numbers = #tpu.dot_dimension_numbers<[1], [0], [0], [1], [0, 0, 1, 1], [], []>} : vector<8x4xf32>, vector<4x128xf32>, vector<8x128xf32> -> vector<8x128xf32>
    %15 = arith.addf %4, %14 : vector<8x128xf32>
    %c2_i32 = arith.constant 2 : i32
    %16 = vector.broadcast %c2_i32 : i32 to vector<1x128xi32>
    %17 = arith.cmpi sge, %1, %16 : vector<1x128xi32>
    %c2_i32_11 = arith.constant 2 : i32
    %18 = tpu.dynamic_rotate %0 by %c2_i32_11 dim 1 : vector<4x128xf32>, i32 -> vector<4x128xf32>
    %cst_12 = arith.constant 0.000000e+00 : f32
    %19 = vector.shape_cast %17 : vector<1x128xi1> to vector<1x128xi1>
    %20 = vector.broadcast %19 : vector<1x128xi1> to vector<4x128xi1>
    %21 = vector.broadcast %cst_12 : f32 to vector<4x128xf32>
    %22 = arith.select %20, %18, %21 : vector<4x128xi1>, vector<4x128xf32>
    %c1 = arith.constant 1 : index
    %c0_13 = arith.constant 0 : index
    %c0_14 = arith.constant 0 : index
    %23 = vector.load %arg3[%c1, %c0_13, %c0_14] : memref<3x8x4xf32, #tpu.memory_space<vmem>>, vector<1x8x4xf32>
    %24 = vector.shape_cast %23 : vector<1x8x4xf32> to vector<8x4xf32>
    %cst_15 = arith.constant dense<0.000000e+00> : vector<8x128xf32>
    %25 = tpu.matmul %24, %22, %cst_15 {dimension_numbers = #tpu.dot_dimension_numbers<[1], [0], [0], [1], [0, 0, 1, 1], [], []>} : vector<8x4xf32>, vector<4x128xf32>, vector<8x128xf32> -> vector<8x128xf32>
    %26 = arith.addf %15, %25 : vector<8x128xf32>
    %c0_16 = arith.constant 0 : index
    %c0_17 = arith.constant 0 : index
    %27 = vector.load %arg4[%c0_16, %c0_17] : memref<8x1xf32, #tpu.memory_space<vmem>>, vector<8x1xf32>
    %28 = vector.broadcast %27 : vector<8x1xf32> to vector<8x128xf32>
    %29 = arith.addf %26, %28 : vector<8x128xf32>
    %cst_18 = arith.constant 0.000000e+00 : f32
    %30 = vector.broadcast %cst_18 : f32 to vector<8x128xf32>
    %31 = arith.maximumf %29, %30 : vector<8x128xf32>
    %c2_19 = arith.constant 2 : index
    %c0_20 = arith.constant 0 : index
    %c0_21 = arith.constant 0 : index
    %32 = vector.load %arg5[%c2_19, %c0_20, %c0_21] : memref<3x8x8xf32, #tpu.memory_space<vmem>>, vector<1x8x8xf32>
    %33 = vector.shape_cast %32 : vector<1x8x8xf32> to vector<8x8xf32>
    %cst_22 = arith.constant dense<0.000000e+00> : vector<8x128xf32>
    %34 = tpu.matmul %33, %31, %cst_22 {dimension_numbers = #tpu.dot_dimension_numbers<[1], [0], [0], [1], [0, 0, 1, 1], [], []>} : vector<8x8xf32>, vector<8x128xf32>, vector<8x128xf32> -> vector<8x128xf32>
    %c4_i32_23 = arith.constant 4 : i32
    %35 = vector.broadcast %c4_i32_23 : i32 to vector<1x128xi32>
    %36 = arith.cmpi sge, %1, %35 : vector<1x128xi32>
    %c4_i32_24 = arith.constant 4 : i32
    %37 = tpu.dynamic_rotate %31 by %c4_i32_24 dim 1 : vector<8x128xf32>, i32 -> vector<8x128xf32>
    %cst_25 = arith.constant 0.000000e+00 : f32
    %38 = vector.shape_cast %36 : vector<1x128xi1> to vector<1x128xi1>
    %39 = vector.broadcast %38 : vector<1x128xi1> to vector<8x128xi1>
    %40 = vector.broadcast %cst_25 : f32 to vector<8x128xf32>
    %41 = arith.select %39, %37, %40 : vector<8x128xi1>, vector<8x128xf32>
    %c0_26 = arith.constant 0 : index
    %c0_27 = arith.constant 0 : index
    %c0_28 = arith.constant 0 : index
    %42 = vector.load %arg5[%c0_26, %c0_27, %c0_28] : memref<3x8x8xf32, #tpu.memory_space<vmem>>, vector<1x8x8xf32>
    %43 = vector.shape_cast %42 : vector<1x8x8xf32> to vector<8x8xf32>
    %cst_29 = arith.constant dense<0.000000e+00> : vector<8x128xf32>
    %44 = tpu.matmul %43, %41, %cst_29 {dimension_numbers = #tpu.dot_dimension_numbers<[1], [0], [0], [1], [0, 0, 1, 1], [], []>} : vector<8x8xf32>, vector<8x128xf32>, vector<8x128xf32> -> vector<8x128xf32>
    %45 = arith.addf %34, %44 : vector<8x128xf32>
    %c2_i32_30 = arith.constant 2 : i32
    %46 = vector.broadcast %c2_i32_30 : i32 to vector<1x128xi32>
    %47 = arith.cmpi sge, %1, %46 : vector<1x128xi32>
    %c2_i32_31 = arith.constant 2 : i32
    %48 = tpu.dynamic_rotate %31 by %c2_i32_31 dim 1 : vector<8x128xf32>, i32 -> vector<8x128xf32>
    %cst_32 = arith.constant 0.000000e+00 : f32
    %49 = vector.shape_cast %47 : vector<1x128xi1> to vector<1x128xi1>
    %50 = vector.broadcast %49 : vector<1x128xi1> to vector<8x128xi1>
    %51 = vector.broadcast %cst_32 : f32 to vector<8x128xf32>
    %52 = arith.select %50, %48, %51 : vector<8x128xi1>, vector<8x128xf32>
    %c1_33 = arith.constant 1 : index
    %c0_34 = arith.constant 0 : index
    %c0_35 = arith.constant 0 : index
    %53 = vector.load %arg5[%c1_33, %c0_34, %c0_35] : memref<3x8x8xf32, #tpu.memory_space<vmem>>, vector<1x8x8xf32>
    %54 = vector.shape_cast %53 : vector<1x8x8xf32> to vector<8x8xf32>
    %cst_36 = arith.constant dense<0.000000e+00> : vector<8x128xf32>
    %55 = tpu.matmul %54, %52, %cst_36 {dimension_numbers = #tpu.dot_dimension_numbers<[1], [0], [0], [1], [0, 0, 1, 1], [], []>} : vector<8x8xf32>, vector<8x128xf32>, vector<8x128xf32> -> vector<8x128xf32>
    %56 = arith.addf %45, %55 : vector<8x128xf32>
    %c0_37 = arith.constant 0 : index
    %c0_38 = arith.constant 0 : index
    %57 = vector.load %arg6[%c0_37, %c0_38] : memref<8x1xf32, #tpu.memory_space<vmem>>, vector<8x1xf32>
    %58 = vector.broadcast %57 : vector<8x1xf32> to vector<8x128xf32>
    %59 = arith.addf %56, %58 : vector<8x128xf32>
    %cst_39 = arith.constant 0.000000e+00 : f32
    %60 = vector.broadcast %cst_39 : f32 to vector<8x128xf32>
    %61 = arith.maximumf %59, %60 : vector<8x128xf32>
    %c0_40 = arith.constant 0 : index
    %c0_41 = arith.constant 0 : index
    %62 = vector.load %arg7[%c0_40, %c0_41] : memref<8x4xf32, #tpu.memory_space<vmem>>, vector<8x4xf32>
    %cst_42 = arith.constant dense<0.000000e+00> : vector<8x128xf32>
    %63 = tpu.matmul %62, %0, %cst_42 {dimension_numbers = #tpu.dot_dimension_numbers<[1], [0], [0], [1], [0, 0, 1, 1], [], []>} : vector<8x4xf32>, vector<4x128xf32>, vector<8x128xf32> -> vector<8x128xf32>
    %c0_43 = arith.constant 0 : index
    %c0_44 = arith.constant 0 : index
    %64 = vector.load %arg8[%c0_43, %c0_44] : memref<8x1xf32, #tpu.memory_space<vmem>>, vector<8x1xf32>
    %65 = vector.broadcast %64 : vector<8x1xf32> to vector<8x128xf32>
    %66 = arith.addf %63, %65 : vector<8x128xf32>
    %67 = arith.addf %61, %66 : vector<8x128xf32>
    %cst_45 = arith.constant 0.000000e+00 : f32
    %68 = vector.broadcast %cst_45 : f32 to vector<8x128xf32>
    %69 = arith.maximumf %67, %68 : vector<8x128xf32>
    %c0_46 = arith.constant 0 : index
    %c0_47 = arith.constant 0 : index
    %70 = vector.load %arg9[%c0_46, %c0_47] : memref<8x128xf32, #tpu.memory_space<vmem>>, vector<8x128xf32>
    tpu.vector_store %arg9[%c0_46, %c0_47], %69 {strides = array<i32>} : memref<8x128xf32, #tpu.memory_space<vmem>>, vector<8x128xf32>,
    return
  }
  func.func @transform_0(%arg0: i32) -> (i32, i32) {
    %c0_i32 = arith.constant 0 : i32
    %c0_i32_0 = arith.constant 0 : i32
    %c0_i32_1 = arith.constant 0 : i32
    return %c0_i32, %c0_i32_0 : i32, i32
  }
  func.func @transform_1(%arg0: i32) -> (i32, i32) {
    %c0_i32 = arith.constant 0 : i32
    %c0_i32_0 = arith.constant 0 : i32
    return %c0_i32, %arg0 : i32, i32
  }
  func.func @transform_2(%arg0: i32) -> (i32, i32, i32) {
    %c0_i32 = arith.constant 0 : i32
    %c0_i32_0 = arith.constant 0 : i32
    %c0_i32_1 = arith.constant 0 : i32
    %c0_i32_2 = arith.constant 0 : i32
    return %c0_i32, %c0_i32_0, %c0_i32_1 : i32, i32, i32
  }
  func.func @transform_3(%arg0: i32) -> (i32, i32) {
    %c0_i32 = arith.constant 0 : i32
    %c0_i32_0 = arith.constant 0 : i32
    %c0_i32_1 = arith.constant 0 : i32
    return %c0_i32, %c0_i32_0 : i32, i32
  }
  func.func @transform_4(%arg0: i32) -> (i32, i32, i32) {
    %c0_i32 = arith.constant 0 : i32
    %c0_i32_0 = arith.constant 0 : i32
    %c0_i32_1 = arith.constant 0 : i32
    %c0_i32_2 = arith.constant 0 : i32
    return %c0_i32, %c0_i32_0, %c0_i32_1 : i32, i32, i32
  }
  func.func @transform_5(%arg0: i32) -> (i32, i32) {
    %c0_i32 = arith.constant 0 : i32
    %c0_i32_0 = arith.constant 0 : i32
    %c0_i32_1 = arith.constant 0 : i32
    return %c0_i32, %c0_i32_0 : i32, i32
  }
  func.func @transform_6(%arg0: i32) -> (i32, i32) {
    %c0_i32 = arith.constant 0 : i32
    %c0_i32_0 = arith.constant 0 : i32
    %c0_i32_1 = arith.constant 0 : i32
    return %c0_i32, %c0_i32_0 : i32, i32
  }
  func.func @transform_7(%arg0: i32) -> (i32, i32) {
    %c0_i32 = arith.constant 0 : i32
    %c0_i32_0 = arith.constant 0 : i32
    %c0_i32_1 = arith.constant 0 : i32
    return %c0_i32, %c0_i32_0 : i32, i32
  }
  func.func @transform_8(%arg0: i32) -> (i32, i32) {
    %c0_i32 = arith.constant 0 : i32
    %c0_i32_0 = arith.constant 0 : i32
    return %c0_i32, %arg0 : i32, i32
  }
}

</mosaic_0001>

<llo_original>
// kernel: tpu_custom_call.1
$region0: #{tpu_custom_call.1}
  #allocation0 [shape = 'u32[]', space=smem, size = 0x4, offset = 0x4, fixed_abs, tag = 'smem constant byte address 0x4 - core index']
  #allocation1 [shape = 'u32[72,128]{1,0:T(1,128)}', space=vmem, size = 0x9000, scoped, tag = 'internal scratch']
  %s0 = inlined_call_operand.vmem [shape: s32[1,128], index: 0, kind: input, shape index: {}]
  %s1 = inlined_call_operand.vmem [shape: f32[4,256], index: 1, kind: input, shape index: {}]
  %s2 = inlined_call_operand.vmem [shape: f32[3,8,4], index: 2, kind: input, shape index: {}]
  %s3 = inlined_call_operand.vmem [shape: f32[8,1], index: 3, kind: input, shape index: {}]
  %s4 = inlined_call_operand.vmem [shape: f32[3,8,8], index: 4, kind: input, shape index: {}]
  %s5 = inlined_call_operand.vmem [shape: f32[8,1], index: 5, kind: input, shape index: {}]
  %s6 = inlined_call_operand.vmem [shape: f32[8,4], index: 6, kind: input, shape index: {}]
  %s7 = inlined_call_operand.vmem [shape: f32[8,1], index: 7, kind: input, shape index: {}]
  %s8 = inlined_call_operand.hbm [shape: f32[8,256], index: 8, kind: output, shape index: {}]
  %s9 = sld [smem:[#allocation0]]
  $region65: #{tpu_custom_call.1} parent=0
    _
  %s11 = ssub.s32 1, %s9
  %s12 = scalar_select 0, %s11, %s9
  $region1: #{tpu_custom_call.1} parent=0
    #allocation2 [shape = 'u8[8192]{0}', space=vmem, size = 0x2000, scoped, tag = 'output window, operand 0']
    #allocation3 [shape = 's32[2]{0}', space=sflag, size = 0x8, scoped, tag = 'scoped memory for tpu_custom_call.1']
    %13 = vsyncpa [#allocation3], 0
    %s14 = scalar_lea.sflag [#allocation3], 1
    %15 = vsyncpa %s14, 0
    loop: start=0, step=1, limit=4
    $region2: #{tpu_custom_call.1} parent=1 // loop_pre_header
      _
    $region3: #{tpu_custom_call.1} parent=1 // loop_header
      %s17 = sphi 0, %s21
      %p18 = scmp.ge.s32.totalorder %s17, 4
      %s25 = sphi 0, %s25
      %s27 = sphi 0, %s25
      %s28 = sphi 0, %s27
      %s42 = sphi 0, %s28
      %s48 = sphi 0, %s50
      %s51 = sphi 0, %s48
      %s52 = sphi 0, %s51
      %s68 = sphi 0, %s52
      %s72 = sphi 0, %s72
      %s74 = sphi 0, %s72
      %s75 = sphi 0, %s74
      %s89 = sphi 0, %s75
      %s93 = sphi 0, %s93
      %s95 = sphi 0, %s93
      %s96 = sphi 0, %s95
      %s110 = sphi 0, %s96
      %s114 = sphi 0, %s114
      %s116 = sphi 0, %s114
      %s117 = sphi 0, %s116
      %s131 = sphi 0, %s117
      %s135 = sphi 0, %s135
      %s137 = sphi 0, %s135
      %s138 = sphi 0, %s137
      %s152 = sphi 0, %s138
      %s156 = sphi 0, %s156
      %s158 = sphi 0, %s156
      %s159 = sphi 0, %s158
      %s173 = sphi 0, %s159
      %s177 = sphi 0, %s177
      %s179 = sphi 0, %s177
      %s180 = sphi 0, %s179
      %s194 = sphi 0, %s180
      %s200 = sphi 0, %s202
      %s203 = sphi 0, %s200
      %s204 = sphi 0, %s203
      %s220 = sphi 0, %s204
    $region4: #{tpu_custom_call.1} parent=1 // loop_header_branch
      %20 = sbr.rel (%p18) target = $region8
    $region5: #{tpu_custom_call.1} parent=1 // loop_body
      %s22 = ssub.s32 %s17, 1
      %s23 = ssub.s32 %s17, 2
      %s24 = sadd.s32 %s17, 1
      %s26 = sadd.s32 %s25, 1
      %p29 = scmp.eq.s32.totalorder %s17, 1
      %p30 = scmp.ne.s32.totalorder %s25, %s27
      %p31 = scmp.eq.s32.totalorder %s17, 0
      %p32 = por %p30, %p31
      %p33 = scmp.ne.s32.totalorder %s25, %s27
      %p34 = scmp.eq.s32.totalorder %s22, 1
      %p35 = por %p33, %p34
      %p36 = scmp.ne.s32.totalorder %s27, %s28
      %p37 = scmp.eq.s32.totalorder %s22, 0
      %p38 = por %p36, %p37
      %p39 = scmp.ne.s32.totalorder %s27, %s28
      %p40 = scmp.eq.s32.totalorder %s23, 1
      %p41 = por %p39, %p40
      %p43 = scmp.ne.s32.totalorder %s28, %s42
      %p44 = scmp.eq.s32.totalorder %s23, 0
      %p45 = por %p43, %p44
      %s46 = ssub.s32 %s17, %s24
      %p47 = scmp.eq.s32.totalorder %s46, 0
      %s49 = sadd.s32 %s48, 1
      %s50 = scalar_select %p47, %s48, %s49
      %p53 = pneg %p47
      %p54 = scmp.eq.s32.totalorder %s17, 1
      %p55 = por %p53, %p54
      %p56 = scmp.ne.s32.totalorder %s48, %s51
      %p57 = scmp.eq.s32.totalorder %s17, 0
      %p58 = por %p56, %p57
      %p59 = scmp.ne.s32.totalorder %s48, %s51
      %p60 = scmp.eq.s32.totalorder %s22, 1
      %p61 = por %p59, %p60
      %p62 = scmp.ne.s32.totalorder %s51, %s52
      %p63 = scmp.eq.s32.totalorder %s22, 0
      %p64 = por %p62, %p63
      %p65 = scmp.ne.s32.totalorder %s51, %s52
      %p66 = scmp.eq.s32.totalorder %s23, 1
      %p67 = por %p65, %p66
      %p69 = scmp.ne.s32.totalorder %s52, %s68
      %p70 = scmp.eq.s32.totalorder %s23, 0
      %p71 = por %p69, %p70
      %s73 = sadd.s32 %s72, 1
      %p76 = scmp.eq.s32.totalorder %s17, 1
      %p77 = scmp.ne.s32.totalorder %s72, %s74
      %p78 = scmp.eq.s32.totalorder %s17, 0
      %p79 = por %p77, %p78
      %p80 = scmp.ne.s32.totalorder %s72, %s74
      %p81 = scmp.eq.s32.totalorder %s22, 1
      %p82 = por %p80, %p81
      %p83 = scmp.ne.s32.totalorder %s74, %s75
      %p84 = scmp.eq.s32.totalorder %s22, 0
      %p85 = por %p83, %p84
      %p86 = scmp.ne.s32.totalorder %s74, %s75
      %p87 = scmp.eq.s32.totalorder %s23, 1
      %p88 = por %p86, %p87
      %p90 = scmp.ne.s32.totalorder %s75, %s89
      %p91 = scmp.eq.s32.totalorder %s23, 0
      %p92 = por %p90, %p91
      %s94 = sadd.s32 %s93, 1
      %p97 = scmp.eq.s32.totalorder %s17, 1
      %p98 = scmp.ne.s32.totalorder %s93, %s95
      %p99 = scmp.eq.s32.totalorder %s17, 0
      %p100 = por %p98, %p99
      %p101 = scmp.ne.s32.totalorder %s93, %s95
      %p102 = scmp.eq.s32.totalorder %s22, 1
      %p103 = por %p101, %p102
      %p104 = scmp.ne.s32.totalorder %s95, %s96
      %p105 = scmp.eq.s32.totalorder %s22, 0
      %p106 = por %p104, %p105
      %p107 = scmp.ne.s32.totalorder %s95, %s96
      %p108 = scmp.eq.s32.totalorder %s23, 1
      %p109 = por %p107, %p108
      %p111 = scmp.ne.s32.totalorder %s96, %s110
      %p112 = scmp.eq.s32.totalorder %s23, 0
      %p113 = por %p111, %p112
      %s115 = sadd.s32 %s114, 1
      %p118 = scmp.eq.s32.totalorder %s17, 1
      %p119 = scmp.ne.s32.totalorder %s114, %s116
      %p120 = scmp.eq.s32.totalorder %s17, 0
      %p121 = por %p119, %p120
      %p122 = scmp.ne.s32.totalorder %s114, %s116
      %p123 = scmp.eq.s32.totalorder %s22, 1
      %p124 = por %p122, %p123
      %p125 = scmp.ne.s32.totalorder %s116, %s117
      %p126 = scmp.eq.s32.totalorder %s22, 0
      %p127 = por %p125, %p126
      %p128 = scmp.ne.s32.totalorder %s116, %s117
      %p129 = scmp.eq.s32.totalorder %s23, 1
      %p130 = por %p128, %p129
      %p132 = scmp.ne.s32.totalorder %s117, %s131
      %p133 = scmp.eq.s32.totalorder %s23, 0
      %p134 = por %p132, %p133
      %s136 = sadd.s32 %s135, 1
      %p139 = scmp.eq.s32.totalorder %s17, 1
      %p140 = scmp.ne.s32.totalorder %s135, %s137
      %p141 = scmp.eq.s32.totalorder %s17, 0
      %p142 = por %p140, %p141
      %p143 = scmp.ne.s32.totalorder %s135, %s137
      %p144 = scmp.eq.s32.totalorder %s22, 1
      %p145 = por %p143, %p144
      %p146 = scmp.ne.s32.totalorder %s137, %s138
      %p147 = scmp.eq.s32.totalorder %s22, 0
      %p148 = por %p146, %p147
      %p149 = scmp.ne.s32.totalorder %s137, %s138
      %p150 = scmp.eq.s32.totalorder %s23, 1
      %p151 = por %p149, %p150
      %p153 = scmp.ne.s32.totalorder %s138, %s152
      %p154 = scmp.eq.s32.totalorder %s23, 0
      %p155 = por %p153, %p154
      %s157 = sadd.s32 %s156, 1
      %p160 = scmp.eq.s32.totalorder %s17, 1
      %p161 = scmp.ne.s32.totalorder %s156, %s158
      %p162 = scmp.eq.s32.totalorder %s17, 0
      %p163 = por %p161, %p162
      %p164 = scmp.ne.s32.totalorder %s156, %s158
      %p165 = scmp.eq.s32.totalorder %s22, 1
      %p166 = por %p164, %p165
      %p167 = scmp.ne.s32.totalorder %s158, %s159
      %p168 = scmp.eq.s32.totalorder %s22, 0
      %p169 = por %p167, %p168
      %p170 = scmp.ne.s32.totalorder %s158, %s159
      %p171 = scmp.eq.s32.totalorder %s23, 1
      %p172 = por %p170, %p171
      %p174 = scmp.ne.s32.totalorder %s159, %s173
      %p175 = scmp.eq.s32.totalorder %s23, 0
      %p176 = por %p174, %p175
      %s178 = sadd.s32 %s177, 1
      %p181 = scmp.eq.s32.totalorder %s17, 1
      %p182 = scmp.ne.s32.totalorder %s177, %s179
      %p183 = scmp.eq.s32.totalorder %s17, 0
      %p184 = por %p182, %p183
      %p185 = scmp.ne.s32.totalorder %s177, %s179
      %p186 = scmp.eq.s32.totalorder %s22, 1
      %p187 = por %p185, %p186
      %p188 = scmp.ne.s32.totalorder %s179, %s180
      %p189 = scmp.eq.s32.totalorder %s22, 0
      %p190 = por %p188, %p189
      %p191 = scmp.ne.s32.totalorder %s179, %s180
      %p192 = scmp.eq.s32.totalorder %s23, 1
      %p193 = por %p191, %p192
      %p195 = scmp.ne.s32.totalorder %s180, %s194
      %p196 = scmp.eq.s32.totalorder %s23, 0
      %p197 = por %p195, %p196
      %s198 = ssub.s32 %s17, %s24
      %p199 = scmp.eq.s32.totalorder %s198, 0
      %s201 = sadd.s32 %s200, 1
      %s202 = scalar_select %p199, %s200, %s201
      %p205 = pneg %p199
      %p206 = scmp.eq.s32.totalorder %s17, 1
      %p207 = por %p205, %p206
      %p208 = scmp.ne.s32.totalorder %s200, %s203
      %p209 = scmp.eq.s32.totalorder %s17, 0
      %p210 = por %p208, %p209
      %p211 = scmp.ne.s32.totalorder %s200, %s203
      %p212 = scmp.eq.s32.totalorder %s22, 1
      %p213 = por %p211, %p212
      %p214 = scmp.ne.s32.totalorder %s203, %s204
      %p215 = scmp.eq.s32.totalorder %s22, 0
      %p216 = por %p214, %p215
      %p217 = scmp.ne.s32.totalorder %s203, %s204
      %p218 = scmp.eq.s32.totalorder %s23, 1
      %p219 = por %p217, %p218
      %p221 = scmp.ne.s32.totalorder %s204, %s220
      %p222 = scmp.eq.s32.totalorder %s23, 0
      %p223 = por %p221, %p222
      %p224 = scmp.le.s32.totalorder 1, %s17
      %p225 = scmp.lt.s32.totalorder %s17, 3
      %p226 = pnand %p224, %p225
      %p227 = pneg %p226
      // Predicated region
      $region9: #{tpu_custom_call.1} parent=5 // pred_check
        _
      $region10: #{tpu_custom_call.1} parent=5 // pred_check_branch
        %229 = sbr.rel (%p226) target = $region12
      $region11: #{tpu_custom_call.1} parent=5 // pred_region
        %s230 = ssub.s32 %s17, 1
        // Predicated region
        $region13: #{tpu_custom_call.1} parent=11 // pred_check
          %p231 = pneg %p38
        $region14: #{tpu_custom_call.1} parent=11 // pred_check_branch
          %233 = sbr.rel (%p231) target = $region16
        $region15: #{tpu_custom_call.1} parent=11 // pred_region
          _
        $region16: #{tpu_custom_call.1} parent=11 // pred_fallthru
          _
        // Predicated region
        $region17: #{tpu_custom_call.1} parent=11 // pred_check
          %p234 = pneg %p85
        $region18: #{tpu_custom_call.1} parent=11 // pred_check_branch
          %236 = sbr.rel (%p234) target = $region20
        $region19: #{tpu_custom_call.1} parent=11 // pred_region
          _
        $region20: #{tpu_custom_call.1} parent=11 // pred_fallthru
          _
        // Predicated region
        $region21: #{tpu_custom_call.1} parent=11 // pred_check
          %p237 = pneg %p106
        $region22: #{tpu_custom_call.1} parent=11 // pred_check_branch
          %239 = sbr.rel (%p237) target = $region24
        $region23: #{tpu_custom_call.1} parent=11 // pred_region
          _
        $region24: #{tpu_custom_call.1} parent=11 // pred_fallthru
          _
        // Predicated region
        $region25: #{tpu_custom_call.1} parent=11 // pred_check
          %p240 = pneg %p127
        $region26: #{tpu_custom_call.1} parent=11 // pred_check_branch
          %242 = sbr.rel (%p240) target = $region28
        $region27: #{tpu_custom_call.1} parent=11 // pred_region
          _
        $region28: #{tpu_custom_call.1} parent=11 // pred_fallthru
          _
        // Predicated region
        $region29: #{tpu_custom_call.1} parent=11 // pred_check
          %p243 = pneg %p148
        $region30: #{tpu_custom_call.1} parent=11 // pred_check_branch
          %245 = sbr.rel (%p243) target = $region32
        $region31: #{tpu_custom_call.1} parent=11 // pred_region
          _
        $region32: #{tpu_custom_call.1} parent=11 // pred_fallthru
          _
        // Predicated region
        $region33: #{tpu_custom_call.1} parent=11 // pred_check
          %p246 = pneg %p169
        $region34: #{tpu_custom_call.1} parent=11 // pred_check_branch
          %248 = sbr.rel (%p246) target = $region36
        $region35: #{tpu_custom_call.1} parent=11 // pred_region
          _
        $region36: #{tpu_custom_call.1} parent=11 // pred_fallthru
          _
        // Predicated region
        $region37: #{tpu_custom_call.1} parent=11 // pred_check
          %p249 = pneg %p190
        $region38: #{tpu_custom_call.1} parent=11 // pred_check_branch
          %251 = sbr.rel (%p249) target = $region40
        $region39: #{tpu_custom_call.1} parent=11 // pred_region
          _
        $region40: #{tpu_custom_call.1} parent=11 // pred_fallthru
          _
      $region12: #{tpu_custom_call.1} parent=5 // pred_fallthru
        _
      %p252 = scmp.lt.s32.totalorder %s17, 2
      // Predicated region
      $region41: #{tpu_custom_call.1} parent=5 // pred_check
        %p253 = pneg %p252
      $region42: #{tpu_custom_call.1} parent=5 // pred_check_branch
        %255 = sbr.rel (%p253) target = $region44
      $region43: #{tpu_custom_call.1} parent=5 // pred_region
        // Predicated region
        $region45: #{tpu_custom_call.1} parent=43 // pred_check
          %p256 = pneg %p58
        $region46: #{tpu_custom_call.1} parent=43 // pred_check_branch
          %258 = sbr.rel (%p256) target = $region48
        $region47: #{tpu_custom_call.1} parent=43 // pred_region
          %p259 = scmp.lt.s32.totalorder %s17, 1
          %s260 = scalar_select %p259, %s17, 1
          %s261 = smul.addr %s260, 4
          %s262 = scalar_lea.vmem %s1, %s261
        $region48: #{tpu_custom_call.1} parent=43 // pred_fallthru
          _
      $region44: #{tpu_custom_call.1} parent=5 // pred_fallthru
        _
      %p263 = scmp.le.s32.totalorder 1, %s17
      %p264 = scmp.lt.s32.totalorder %s17, 3
      %p265 = pnand %p263, %p264
      %p266 = pneg %p265
      // Predicated region
      $region49: #{tpu_custom_call.1} parent=5 // pred_check
        _
      $region50: #{tpu_custom_call.1} parent=5 // pred_check_branch
        %268 = sbr.rel (%p265) target = $region52
      $region51: #{tpu_custom_call.1} parent=5 // pred_region
        %s269 = ssub.s32 %s17, 1
        %p270 = pneg %p38
        %p271 = pneg %p35
        %p272 = scmp.lt.s32.totalorder %s22, 1
        %s273 = scalar_select %p272, %s22, 1
        %s274 = smul.addr %s273, 4
        %s275 = scalar_lea.vmem %s1, %s274
        %p276 = pneg %p64
        %p277 = pneg %p61
        %p278 = pneg %p85
        %p279 = pneg %p82
        %p280 = pneg %p106
        %p281 = pneg %p103
        %p282 = pneg %p127
        %p283 = pneg %p124
        %p284 = pneg %p148
        %p285 = pneg %p145
        %p286 = pneg %p169
        %p287 = pneg %p166
        %p288 = pneg %p190
        %p289 = pneg %p187
        %p290 = pneg %p216
        %p291 = pneg %p213
        %s292 = sand.u32 %s203, 1
        %s293 = scalar_lea.sflag [#allocation3], %s292
        %s294 = sand.u32 %s203, 1
        %s295 = smul.addr %s294, 8
        %s296 = scalar_lea.vmem [#allocation2], %s295
        %p297 = scmp.lt.s32.totalorder %s22, 1
        %s298 = scalar_select %p297, %s22, 1
        %s299 = smul.addr %s298, 4
        %s300 = scalar_lea.vmem %s1, %s299
        %v301 = vld [vmem:[%s300] sm:$0xf]
        %v302 = vld [vmem:[%s0] sm:$0x1]
        %s303 = scalar_lea.vmem %s2, 16
        %v304 = vld [vmem:[%s303] sm:$0xff]
        %vm305 = vcmp.ge.s32.totalorder %v302, 4
        %306 = vrot.lane.b32.xlu0 %v301, 4
        %v307 = vpop.permute.xlu0 %306
        %v308 = vsel %vm305, 1, 0
        %v309 = vperm.slane %v308, 0
        %vm310 = vcmp.eq.s32.totalorder %v309, 1
        %v311 = vsel %vm310, %v307, 0.0
        %v312 = vld [vmem:[%s2] sm:$0xff]
        %vm313 = vcmask 31744
        %v315 = vsel %vm313, %v312, 0
        %vm317 = vcmask 1043456
        %v319 = vsel %vm317, %v311, 0
        %321 = vmatpush.msra.mxu0 0.0
        %322 = vmatpush.msra.mxu0 0.0
        %323 = vmatpush.msra.mxu0 0.0
        %324 = vmatpush.msra.mxu0 0.0
        %325 = vmatpush.msra.mxu0 0.0
        %326 = vmatpush.msra.mxu0 0.0
        %327 = vmatpush.msra.mxu0 0.0
        %328 = vmatpush.msra.mxu0 0.0
        %329 = vmatpush.msra.mxu0 0.0
        %330 = vmatpush.msra.mxu0 0.0
        %331 = vmatpush.msra.mxu0 0.0
        %332 = vmatpush.msra.mxu0 0.0
        %333 = vmatpush.msra.mxu0 0.0
        %334 = vmatpush.msra.mxu0 0.0
        %335 = vmatpush.msra.mxu0 0.0
        %336 = vmatpush.msra.mxu0 %v319
        %337 = vmatmul.f32.gmra.mxu0 %v315
        %v338 = vpop.f32.mrf.mxu0
        %v339 = vadd.f32 0.0, %v338
        %340 = vdwg.mxu0
        %v342 = vsel %vm313, %v304, 0
        %v345 = vsel %vm317, %v301, 0
        %347 = vmatpush.msra.mxu0 0.0
        %348 = vmatpush.msra.mxu0 0.0
        %349 = vmatpush.msra.mxu0 0.0
        %350 = vmatpush.msra.mxu0 0.0
        %351 = vmatpush.msra.mxu0 0.0
        %352 = vmatpush.msra.mxu0 0.0
        %353 = vmatpush.msra.mxu0 0.0
        %354 = vmatpush.msra.mxu0 0.0
        %355 = vmatpush.msra.mxu0 0.0
        %356 = vmatpush.msra.mxu0 0.0
        %357 = vmatpush.msra.mxu0 0.0
        %358 = vmatpush.msra.mxu0 0.0
        %359 = vmatpush.msra.mxu0 0.0
        %360 = vmatpush.msra.mxu0 0.0
        %361 = vmatpush.msra.mxu0 0.0
        %362 = vmatpush.msra.mxu0 %v345
        %363 = vmatmul.f32.gmra.mxu0 %v342
        %v364 = vpop.f32.mrf.mxu0
        %v365 = vadd.f32 %v339, %v364
        %366 = vdwg.mxu0
        %vm367 = vcmp.ge.s32.totalorder %v302, 2
        %368 = vrot.lane.b32.xlu0 %v301, 2
        %v369 = vpop.permute.xlu0 %368
        %v370 = vsel %vm367, 1, 0
        %v371 = vperm.slane %v370, 0
        %vm372 = vcmp.eq.s32.totalorder %v371, 1
        %v373 = vsel %vm372, %v369, 0.0
        %s374 = scalar_lea.vmem %s2, 8
        %v375 = vld [vmem:[%s374] sm:$0xff]
        %v377 = vsel %vm313, %v375, 0
        %v380 = vsel %vm317, %v373, 0
        %382 = vmatpush.msra.mxu0 0.0
        %383 = vmatpush.msra.mxu0 0.0
        %384 = vmatpush.msra.mxu0 0.0
        %385 = vmatpush.msra.mxu0 0.0
        %386 = vmatpush.msra.mxu0 0.0
        %387 = vmatpush.msra.mxu0 0.0
        %388 = vmatpush.msra.mxu0 0.0
        %389 = vmatpush.msra.mxu0 0.0
        %390 = vmatpush.msra.mxu0 0.0
        %391 = vmatpush.msra.mxu0 0.0
        %392 = vmatpush.msra.mxu0 0.0
        %393 = vmatpush.msra.mxu0 0.0
        %394 = vmatpush.msra.mxu0 0.0
        %395 = vmatpush.msra.mxu0 0.0
        %396 = vmatpush.msra.mxu0 0.0
        %397 = vmatpush.msra.mxu0 %v380
        %398 = vmatmul.f32.gmra.mxu0 %v377
        %v399 = vpop.f32.mrf.mxu0
        %v400 = vadd.f32 0.0, %v399
        %401 = vdwg.mxu0
        %v402 = vadd.f32 %v365, %v400
        %v403 = vld [vmem:[%s3] sm:$0xff]
        %405 = vset.pattern.permute.xlu0 0
        %406 = vperm.xlu0 %405, %v403
        %v407 = vpop.permute.xlu0 %406
        %v409 = vadd.f32 %v402, %v407
        %v410 = vmax.f32 %v409, 0.0
        %s411 = scalar_lea.vmem %s4, 16
        %v412 = vld [vmem:[%s411] sm:$0xff]
        %413 = vrot.lane.b32.xlu0 %v410, 4
        %v414 = vpop.permute.xlu0 %413
        %v415 = vsel %vm310, %v414, 0.0
        %v416 = vld [vmem:[%s4] sm:$0xff]
        %vm417 = vcmask 64512
        %v419 = vsel %vm417, %v416, 0
        %421 = vmatpush.msra.mxu0 0.0
        %422 = vmatpush.msra.mxu0 0.0
        %423 = vmatpush.msra.mxu0 0.0
        %424 = vmatpush.msra.mxu0 0.0
        %425 = vmatpush.msra.mxu0 0.0
        %426 = vmatpush.msra.mxu0 0.0
        %427 = vmatpush.msra.mxu0 0.0
        %428 = vmatpush.msra.mxu0 0.0
        %429 = vmatpush.msra.mxu0 0.0
        %430 = vmatpush.msra.mxu0 0.0
        %431 = vmatpush.msra.mxu0 0.0
        %432 = vmatpush.msra.mxu0 0.0
        %433 = vmatpush.msra.mxu0 0.0
        %434 = vmatpush.msra.mxu0 0.0
        %435 = vmatpush.msra.mxu0 0.0
        %436 = vmatpush.msra.mxu0 %v415
        %437 = vmatmul.f32.gmra.mxu0 %v419
        %v438 = vpop.f32.mrf.mxu0
        %v439 = vadd.f32 0.0, %v438
        %440 = vdwg.mxu0
        %v442 = vsel %vm417, %v412, 0
        %444 = vmatpush.msra.mxu0 0.0
        %445 = vmatpush.msra.mxu0 0.0
        %446 = vmatpush.msra.mxu0 0.0
        %447 = vmatpush.msra.mxu0 0.0
        %448 = vmatpush.msra.mxu0 0.0
        %449 = vmatpush.msra.mxu0 0.0
        %450 = vmatpush.msra.mxu0 0.0
        %451 = vmatpush.msra.mxu0 0.0
        %452 = vmatpush.msra.mxu0 0.0
        %453 = vmatpush.msra.mxu0 0.0
        %454 = vmatpush.msra.mxu0 0.0
        %455 = vmatpush.msra.mxu0 0.0
        %456 = vmatpush.msra.mxu0 0.0
        %457 = vmatpush.msra.mxu0 0.0
        %458 = vmatpush.msra.mxu0 0.0
        %459 = vmatpush.msra.mxu0 %v410
        %460 = vmatmul.f32.gmra.mxu0 %v442
        %v461 = vpop.f32.mrf.mxu0
        %v462 = vadd.f32 %v439, %v461
        %463 = vdwg.mxu0
        %464 = vrot.lane.b32.xlu0 %v410, 2
        %v465 = vpop.permute.xlu0 %464
        %v466 = vsel %vm372, %v465, 0.0
        %s467 = scalar_lea.vmem %s4, 8
        %v468 = vld [vmem:[%s467] sm:$0xff]
        %v470 = vsel %vm417, %v468, 0
        %472 = vmatpush.msra.mxu0 0.0
        %473 = vmatpush.msra.mxu0 0.0
        %474 = vmatpush.msra.mxu0 0.0
        %475 = vmatpush.msra.mxu0 0.0
        %476 = vmatpush.msra.mxu0 0.0
        %477 = vmatpush.msra.mxu0 0.0
        %478 = vmatpush.msra.mxu0 0.0
        %479 = vmatpush.msra.mxu0 0.0
        %480 = vmatpush.msra.mxu0 0.0
        %481 = vmatpush.msra.mxu0 0.0
        %482 = vmatpush.msra.mxu0 0.0
        %483 = vmatpush.msra.mxu0 0.0
        %484 = vmatpush.msra.mxu0 0.0
        %485 = vmatpush.msra.mxu0 0.0
        %486 = vmatpush.msra.mxu0 0.0
        %487 = vmatpush.msra.mxu0 %v466
        %488 = vmatmul.f32.gmra.mxu0 %v470
        %v489 = vpop.f32.mrf.mxu0
        %v490 = vadd.f32 0.0, %v489
        %491 = vdwg.mxu0
        %v492 = vadd.f32 %v462, %v490
        %v493 = vld [vmem:[%s5] sm:$0xff]
        %495 = vset.pattern.permute.xlu0 0
        %496 = vperm.xlu0 %495, %v493
        %v497 = vpop.permute.xlu0 %496
        %v499 = vadd.f32 %v492, %v497
        %v500 = vmax.f32 %v499, 0.0
        %v501 = vld [vmem:[%s6] sm:$0xff]
        %v502 = vld [vmem:[%s7] sm:$0xff]
        %504 = vset.pattern.permute.xlu0 0
        %505 = vperm.xlu0 %504, %v502
        %v506 = vpop.permute.xlu0 %505
        %v509 = vsel %vm313, %v501, 0
        %511 = vmatpush.msra.mxu0 0.0
        %512 = vmatpush.msra.mxu0 0.0
        %513 = vmatpush.msra.mxu0 0.0
        %514 = vmatpush.msra.mxu0 0.0
        %515 = vmatpush.msra.mxu0 0.0
        %516 = vmatpush.msra.mxu0 0.0
        %517 = vmatpush.msra.mxu0 0.0
        %518 = vmatpush.msra.mxu0 0.0
        %519 = vmatpush.msra.mxu0 0.0
        %520 = vmatpush.msra.mxu0 0.0
        %521 = vmatpush.msra.mxu0 0.0
        %522 = vmatpush.msra.mxu0 0.0
        %523 = vmatpush.msra.mxu0 0.0
        %524 = vmatpush.msra.mxu0 0.0
        %525 = vmatpush.msra.mxu0 0.0
        %526 = vmatpush.msra.mxu0 %v345
        %527 = vmatmul.f32.gmra.mxu0 %v509
        %v528 = vpop.f32.mrf.mxu0
        %v529 = vadd.f32 %v506, %v528
        %530 = vdwg.mxu0
        %v531 = vadd.f32 %v500, %v529
        %v532 = vmax.f32 %v531, 0.0
        %533 = vst [vmem:[%s296] sm:$0xff] %v532
        %s534 = sand.u32 %s203, 1
        %s535 = scalar_lea.sflag [#allocation3], %s534
        %s536 = sand.u32 %s203, 1
        %s537 = smul.addr %s536, 8
        %s538 = scalar_lea.vmem [#allocation2], %s537
        // Predicated region
        $region53: #{tpu_custom_call.1} parent=51 // pred_check
          %p539 = pneg %p213
        $region54: #{tpu_custom_call.1} parent=51 // pred_check_branch
          %541 = sbr.rel (%p539) target = $region56
        $region55: #{tpu_custom_call.1} parent=51 // pred_region
          %543 = vsyncadd %s535, 0
          %s544 = smul.addr %s22, 8
          %s545 = scalar_lea.hbm %s8, %s544
          %s547 = sshll.u32 %s538, 4
          %s548 = int_to_ptr.vmem [resolvable:$true] %s547
          %s549 = sshll.u32 %s545, 4
          %s550 = int_to_ptr.hbm [resolvable:$true] %s549
          %552 = dma.vmem_to_hbm [thread:$0]  %s548, 128, %s550, %s535
        $region56: #{tpu_custom_call.1} parent=51 // pred_fallthru
          _
      $region52: #{tpu_custom_call.1} parent=5 // pred_fallthru
        _
      %p553 = scmp.le.s32.totalorder 2, %s17
      // Predicated region
      $region57: #{tpu_custom_call.1} parent=5 // pred_check
        %p554 = pneg %p553
      $region58: #{tpu_custom_call.1} parent=5 // pred_check_branch
        %556 = sbr.rel (%p554) target = $region60
      $region59: #{tpu_custom_call.1} parent=5 // pred_region
        %s557 = ssub.s32 %s17, 2
        // Predicated region
        $region61: #{tpu_custom_call.1} parent=59 // pred_check
          %p558 = pneg %p219
        $region62: #{tpu_custom_call.1} parent=59 // pred_check_branch
          %560 = sbr.rel (%p558) target = $region64
        $region63: #{tpu_custom_call.1} parent=59 // pred_region
          %s561 = sand.u32 %s204, 1
          %s562 = scalar_lea.sflag [#allocation3], %s561
          %s563 = sand.u32 %s204, 1
          %s564 = smul.addr %s563, 8
          %s565 = scalar_lea.vmem [#allocation2], %s564
          %567 = dma.done %s562, 128
        $region64: #{tpu_custom_call.1} parent=59 // pred_fallthru
          _
      $region60: #{tpu_custom_call.1} parent=5 // pred_fallthru
        _
    $region6: #{tpu_custom_call.1} parent=1 // loop_footer
      %s21 = sadd.s32 1, %s17
    $region7: #{tpu_custom_call.1} parent=1 // loop_footer_branch
      %16 = sbr.rel target = $region3
    $region8: #{tpu_custom_call.1} parent=1 // loop_exit
      _
    %568 = vsyncpa [#allocation3], 1
    %s569 = scalar_lea.sflag [#allocation3], 1
    %570 = vsyncpa %s569, 1

</llo_original>
